<compile_context>
chip_gen: v5e
topology: v5e:2x2
jax: 0.10.0
libtpu: 0.0.40
codegen_flags: <defaults>
</compile_context>

<pallas_src>
import jax
import jax.numpy as jnp
from jax.experimental import pallas as pl
from jax.experimental.pallas import tpu as pltpu

MASK_VALUE = -1e30


# ---------------------------------------------------------------------------
# kernel: Bt batch elements per grid step
# ---------------------------------------------------------------------------
def cq_concat_kernel(ctx_ref, qry_ref, qmask_ref, poolw_ref, wc_ref, wp_ref, bias_ref, out_ref):
    f32 = jnp.float32
    bf16 = jnp.bfloat16
    Bt, Lc, D = ctx_ref.shape
    Lq = qry_ref.shape[1]

    # ---- WeightedPool (f32 path; softmax stays f32 -- v5e has no bf16 VPU/EUP) ----
    q = qry_ref[...]                                      # (Bt, Lq, D) f32
    w = poolw_ref[...]                                    # (1, D)  WeightedPool weight^T
    mask = qmask_ref[...][:, 0, :]                        # (Bt, Lq) 0/1 float

    # alpha_{b,l} = <q_{b,l,:}, w> : tiny D-contraction for all Bt*Lq rows at once
    # (VPU mul + lane reduce; keeps the MXU free for the big conv matmul).
    alpha = jnp.sum(q * w[0], axis=-1)                    # (Bt, Lq)
    alpha = alpha + (1.0 - mask) * MASK_VALUE             # mask_logits
    alpha = alpha - jnp.max(alpha, axis=-1, keepdims=True)
    e = jnp.exp(alpha)
    p = e / jnp.sum(e, axis=-1, keepdims=True)            # exact softmax over Lq

    # pooled_{b,d} = sum_l p_{b,l} * q_{b,l,d} : Bt-batched, one broadcast-mul + sublane reduce
    pooled = jnp.sum(p[:, :, None] * q, axis=1)           # (Bt, D) f32

    # ---- repeat + concat + Conv1D(2D -> D, k=1), concat never materialized ----
    # cat([ctx, pooled.repeat(Lc)], -1) @ W + b == ctx @ W[:D] + pooled @ W[D:] + b
    ctx2 = ctx_ref[...].reshape(Bt * Lc, D)               # bf16, M = Bt*Lc MXU rows
    ctx_part = jnp.dot(ctx2, wc_ref[...], preferred_element_type=f32)              # (Bt*Lc, D)
    pool_part = jnp.dot(pooled.astype(bf16), wp_ref[...], preferred_element_type=f32)  # (Bt, D)

    out = (ctx_part.reshape(Bt, Lc, D)
           + pool_part[:, None, :]                        # broadcast over Lc
           + bias_ref[...].reshape(1, 1, D))
    out_ref[...] = out.astype(out_ref.dtype)              # bf16 store, lane-dense when D%128==0


# ---------------------------------------------------------------------------
# wrapper
# ---------------------------------------------------------------------------
def _choose_batch_tile(B, Lc, Lq, D, vmem_tile_budget=24 * 1024 * 1024):
    # Per-batch-element bytes of double-buffered tiles: ctx(bf16)+out(bf16)+query(f32)+mask(f32)
    per_b = 2 * (Lc * D * 2 + Lc * D * 2 + Lq * D * 4 + Lq * 4)
    bt = max(1, min(B, vmem_tile_budget // max(per_b, 1)))
    if B >= 2:
        bt = min(bt, B // 2)          # keep >= 2 grid steps so both v7x TensorCores get work
    while B % bt:                     # largest divisor of B not exceeding bt (even batch tiles)
        bt -= 1
    return bt


def cq_concatenate(context, query, q_mask, params, *, batch_tile=None):
    B, Lc, D = context.shape
    _, Lq, _ = query.shape

    bt = batch_tile if batch_tile is not None else _choose_batch_tile(B, Lc, Lq, D)
    assert B % bt == 0
    grid = (B // bt,)

    # One-time dtype plumbing outside the kernel (no per-step casts, halved HBM traffic).
    ctx_bf16 = context.astype(jnp.bfloat16)
    qry_f32 = query.astype(jnp.float32)
    qmask3 = q_mask.astype(jnp.float32).reshape(B, 1, Lq)
    pool_w = params["pool_w"].astype(jnp.float32)
    wc_bf16 = params["conv_wc"].astype(jnp.bfloat16)
    wp_bf16 = params["conv_wp"].astype(jnp.bfloat16)
    bias = params["conv_b"].astype(jnp.float32)

    # Explicit VMEM budget: double-buffered tiles + single-buffered weights, 2x headroom,
    # floored at the 32 MiB default and capped at v7x's 64 MiB physical VMEM.
    tile_bytes = 2 * bt * (Lc * D * 2 + Lc * D * 2 + Lq * D * 4 + Lq * 4)
    const_bytes = 2 * D * D * 2 + 2 * D * 4
    vmem_limit = int(min(64 * 1024 * 1024,
                         max(32 * 1024 * 1024, 2 * (tile_bytes + const_bytes))))

    const_kw = dict(pipeline_mode=pl.Buffered(1))   # constant-index blocks: no double-buffer

    return pl.pallas_call(
        cq_concat_kernel,
        out_shape=jax.ShapeDtypeStruct((B, Lc, D), jnp.bfloat16),
        grid=grid,
        in_specs=[
            pl.BlockSpec((bt, Lc, D), lambda b: (b, 0, 0)),            # context (bf16)
            pl.BlockSpec((bt, Lq, D), lambda b: (b, 0, 0)),            # query   (f32)
            pl.BlockSpec((bt, 1, Lq), lambda b: (b, 0, 0)),            # q_mask rows
            pl.BlockSpec((1, D), lambda b: (0, 0), **const_kw),        # WeightedPool weight^T
            pl.BlockSpec((D, D), lambda b: (0, 0), **const_kw),        # conv W, context half (bf16)
            pl.BlockSpec((D, D), lambda b: (0, 0), **const_kw),        # conv W, pooled half  (bf16)
            pl.BlockSpec((1, D), lambda b: (0, 0), **const_kw),        # conv bias
        ],
        out_specs=pl.BlockSpec((bt, Lc, D), lambda b: (b, 0, 0)),
        compiler_params=pltpu.CompilerParams(
            dimension_semantics=("parallel",),
            vmem_limit_bytes=vmem_limit,
        ),
    )(ctx_bf16, qry_f32, qmask3, pool_w, wc_bf16, wp_bf16, bias)


# ---------------------------------------------------------------------------
# pure-JAX reference (mirrors the PyTorch forward) for a correctness check
# ---------------------------------------------------------------------------
def cq_concatenate_ref(context, query, q_mask, params):
    alpha = jnp.einsum("bld,d->bl", query, params["pool_w"][0])          # (B, Lq)
    alpha = alpha + (1.0 - q_mask) * MASK_VALUE                          # mask_logits
    alphas = jax.nn.softmax(alpha, axis=-1)                              # softmax over Lq
    pooled = jnp.einsum("bl,bld->bd", alphas, query)                     # (B, D)
    out = (jnp.einsum("bld,de->ble", context, params["conv_wc"])
           + jnp.einsum("bd,de->be", pooled, params["conv_wp"])[:, None, :]
           + params["conv_b"][0])
    return out


# ---------------------------------------------------------------------------
if __name__ == "__main__":
    # D a multiple of 128 -> lane-dense output stores; B=4 -> 2 grid steps of Bt=2.
    B, Lc, Lq, D = 4, 16, 8, 128
    key = jax.random.PRNGKey(0)
    kc, kq, km, kw = jax.random.split(key, 4)

    context = jax.random.normal(kc, (B, Lc, D), dtype=jnp.float32)
    query = jax.random.normal(kq, (B, Lq, D), dtype=jnp.float32)
    q_mask = (jax.random.uniform(km, (B, Lq)) > 0.25).astype(jnp.float32)
    q_mask = q_mask.at[:, 0].set(1.0)          # guarantee at least one valid query token

    kw1, kw2, kw3 = jax.random.split(kw, 3)
    params = dict(
        # WeightedPool: weight is (D, 1) in torch; stored transposed as (1, D) here.
        pool_w=(0.1 * jax.random.normal(kw1, (1, D))).astype(jnp.float32),
        # nn.Conv1d(2D, D, 1).weight has shape (D, 2D, 1); channel-last matmul form is
        # W = weight[:, :, 0].T (2D, D), split into the context half W[:D] and pooled half W[D:].
        conv_wc=(0.05 * jax.random.normal(kw2, (D, D))).astype(jnp.float32),
        conv_wp=(0.05 * jax.random.normal(kw3, (D, D))).astype(jnp.float32),
        conv_b=jnp.full((1, D), 0.01, jnp.float32),
    )

    fwd = jax.jit(cq_concatenate)
    out = fwd(context, query, q_mask, params)
    jax.block_until_ready(out)

    ref = cq_concatenate_ref(context, query, q_mask, params)
    assert out.shape == (B, Lc, D) and out.dtype == jnp.bfloat16
    out32 = out.astype(jnp.float32)
    assert bool(jnp.all(jnp.isfinite(out32)))
    # bf16 context/weights/output with f32 accumulation -> loose tolerance vs the f32 reference.
    assert bool(jnp.allclose(out32, ref, rtol=5e-2, atol=5e-2)), float(jnp.max(jnp.abs(out32 - ref)))
    print("KERNEL_OK")
</pallas_src>

<mosaic_0001>
module attributes {stable_mosaic.version = 11 : i64} {
  func.func @cq_concat_kernel(%arg0: i32, %arg1: memref<2x16x128xbf16, #tpu.memory_space<vmem>>, %arg2: memref<2x8x128xf32, #tpu.memory_space<vmem>>, %arg3: memref<2x1x8xf32, #tpu.memory_space<vmem>>, %arg4: memref<1x128xf32, #tpu.memory_space<vmem>>, %arg5: memref<128x128xbf16, #tpu.memory_space<vmem>>, %arg6: memref<128x128xbf16, #tpu.memory_space<vmem>>, %arg7: memref<1x128xf32, #tpu.memory_space<vmem>>, %arg8: memref<2x16x128xbf16, #tpu.memory_space<vmem>>) attributes {dimension_semantics = [#tpu.dimension_semantics<parallel>], iteration_bounds = array<i64: 2>, scalar_prefetch = 0 : i64, scratch_operands = 0 : i64, tpu.core_type = #tpu.core_type<tc>, window_params = [{transform_indices = @transform_0, window_bounds = array<i64: 2, 16, 128>}, {transform_indices = @transform_1, window_bounds = array<i64: 2, 8, 128>}, {transform_indices = @transform_2, window_bounds = array<i64: 2, 1, 8>}, {pipeline_mode = #tpu.pipeline_mode<synchronous>, transform_indices = @transform_3, window_bounds = array<i64: 1, 128>}, {pipeline_mode = #tpu.pipeline_mode<synchronous>, transform_indices = @transform_4, window_bounds = array<i64: 128, 128>}, {pipeline_mode = #tpu.pipeline_mode<synchronous>, transform_indices = @transform_5, window_bounds = array<i64: 128, 128>}, {pipeline_mode = #tpu.pipeline_mode<synchronous>, transform_indices = @transform_6, window_bounds = array<i64: 1, 128>}, {transform_indices = @transform_7, window_bounds = array<i64: 2, 16, 128>}]} {
    %c0 = arith.constant 0 : index
    %c0_0 = arith.constant 0 : index
    %c0_1 = arith.constant 0 : index
    %0 = vector.load %arg2[%c0, %c0_0, %c0_1] : memref<2x8x128xf32, #tpu.memory_space<vmem>>, vector<2x8x128xf32>
    %c0_2 = arith.constant 0 : index
    %c0_3 = arith.constant 0 : index
    %1 = vector.load %arg4[%c0_2, %c0_3] : memref<1x128xf32, #tpu.memory_space<vmem>>, vector<1x128xf32>
    %c0_4 = arith.constant 0 : index
    %c0_5 = arith.constant 0 : index
    %c0_6 = arith.constant 0 : index
    %2 = vector.load %arg3[%c0_4, %c0_5, %c0_6] : memref<2x1x8xf32, #tpu.memory_space<vmem>>, vector<2x1x8xf32>
    %3 = vector.shape_cast %2 : vector<2x1x8xf32> to vector<2x8xf32>
    %4 = vector.shape_cast %1 : vector<1x128xf32> to vector<128xf32>
    %5 = vector.shape_cast %4 : vector<128xf32> to vector<1x1x128xf32>
    %6 = vector.broadcast %5 : vector<1x1x128xf32> to vector<2x8x128xf32>
    %7 = arith.mulf %0, %6 : vector<2x8x128xf32>
    %cst = arith.constant dense<0.000000e+00> : vector<2x8xf32>
    %8 = vector.multi_reduction <add>, %7, %cst [2] : vector<2x8x128xf32> to vector<2x8xf32>
    %cst_7 = arith.constant 1.000000e+00 : f32
    %9 = vector.broadcast %cst_7 : f32 to vector<2x8xf32>
    %10 = arith.subf %9, %3 : vector<2x8xf32>
    %cst_8 = arith.constant -1.000000e+30 : f32
    %11 = vector.broadcast %cst_8 : f32 to vector<2x8xf32>
    %12 = arith.mulf %10, %11 : vector<2x8xf32>
    %13 = arith.addf %8, %12 : vector<2x8xf32>
    %cst_9 = arith.constant dense<0xFF800000> : vector<2xf32>
    %14 = vector.multi_reduction <maximumf>, %13, %cst_9 [1] : vector<2x8xf32> to vector<2xf32>
    %15 = vector.shape_cast %14 : vector<2xf32> to vector<2x1xf32>
    %16 = vector.broadcast %15 : vector<2x1xf32> to vector<2x8xf32>
    %17 = arith.subf %13, %16 : vector<2x8xf32>
    %18 = math.exp %17 : vector<2x8xf32>
    %cst_10 = arith.constant dense<0.000000e+00> : vector<2xf32>
    %19 = vector.multi_reduction <add>, %18, %cst_10 [1] : vector<2x8xf32> to vector<2xf32>
    %20 = vector.shape_cast %19 : vector<2xf32> to vector<2x1xf32>
    %21 = vector.broadcast %20 : vector<2x1xf32> to vector<2x8xf32>
    %22 = arith.divf %18, %21 : vector<2x8xf32>
    %23 = vector.shape_cast %22 : vector<2x8xf32> to vector<2x8x1xf32>
    %24 = vector.broadcast %23 : vector<2x8x1xf32> to vector<2x8x128xf32>
    %25 = arith.mulf %24, %0 : vector<2x8x128xf32>
    %cst_11 = arith.constant dense<0.000000e+00> : vector<2x128xf32>
    %26 = vector.multi_reduction <add>, %25, %cst_11 [1] : vector<2x8x128xf32> to vector<2x128xf32>
    %c0_12 = arith.constant 0 : index
    %c0_13 = arith.constant 0 : index
    %c0_14 = arith.constant 0 : index
    %27 = vector.load %arg1[%c0_12, %c0_13, %c0_14] : memref<2x16x128xbf16, #tpu.memory_space<vmem>>, vector<2x16x128xbf16>
    %28 = vector.shape_cast %27 : vector<2x16x128xbf16> to vector<32x128xbf16>
    %c0_15 = arith.constant 0 : index
    %c0_16 = arith.constant 0 : index
    %29 = vector.load %arg5[%c0_15, %c0_16] : memref<128x128xbf16, #tpu.memory_space<vmem>>, vector<128x128xbf16>
    %cst_17 = arith.constant dense<0.000000e+00> : vector<32x128xf32>
    %30 = tpu.matmul %28, %29, %cst_17 {dimension_numbers = #tpu.dot_dimension_numbers<[1], [0], [0], [1], [0, 0, 1, 1], [], []>} : vector<32x128xbf16>, vector<128x128xbf16>, vector<32x128xf32> -> vector<32x128xf32>
    %31 = arith.truncf %26 : vector<2x128xf32> to vector<2x128xbf16>
    %c0_18 = arith.constant 0 : index
    %c0_19 = arith.constant 0 : index
    %32 = vector.load %arg6[%c0_18, %c0_19] : memref<128x128xbf16, #tpu.memory_space<vmem>>, vector<128x128xbf16>
    %cst_20 = arith.constant dense<0.000000e+00> : vector<2x128xf32>
    %33 = tpu.matmul %31, %32, %cst_20 {dimension_numbers = #tpu.dot_dimension_numbers<[1], [0], [0], [1], [0, 0, 1, 1], [], []>} : vector<2x128xbf16>, vector<128x128xbf16>, vector<2x128xf32> -> vector<2x128xf32>
    %34 = vector.shape_cast %30 : vector<32x128xf32> to vector<2x16x128xf32>
    %35 = vector.shape_cast %33 : vector<2x128xf32> to vector<2x1x128xf32>
    %36 = vector.broadcast %35 : vector<2x1x128xf32> to vector<2x16x128xf32>
    %37 = arith.addf %34, %36 : vector<2x16x128xf32>
    %c0_21 = arith.constant 0 : index
    %c0_22 = arith.constant 0 : index
    %38 = vector.load %arg7[%c0_21, %c0_22] : memref<1x128xf32, #tpu.memory_space<vmem>>, vector<1x128xf32>
    %39 = vector.shape_cast %38 : vector<1x128xf32> to vector<1x1x128xf32>
    %40 = vector.broadcast %39 : vector<1x1x128xf32> to vector<2x16x128xf32>
    %41 = arith.addf %37, %40 : vector<2x16x128xf32>
    %42 = arith.truncf %41 : vector<2x16x128xf32> to vector<2x16x128xbf16>
    %c0_23 = arith.constant 0 : index
    %c0_24 = arith.constant 0 : index
    %c0_25 = arith.constant 0 : index
    %43 = vector.load %arg8[%c0_23, %c0_24, %c0_25] : memref<2x16x128xbf16, #tpu.memory_space<vmem>>, vector<2x16x128xbf16>
    tpu.vector_store %arg8[%c0_23, %c0_24, %c0_25], %42 {strides = array<i32>} : memref<2x16x128xbf16, #tpu.memory_space<vmem>>, vector<2x16x128xbf16>,
    return
  }
  func.func @transform_0(%arg0: i32) -> (i32, i32, i32) {
    %c0_i32 = arith.constant 0 : i32
    %c0_i32_0 = arith.constant 0 : i32
    %c0_i32_1 = arith.constant 0 : i32
    return %arg0, %c0_i32, %c0_i32_0 : i32, i32, i32
  }
  func.func @transform_1(%arg0: i32) -> (i32, i32, i32) {
    %c0_i32 = arith.constant 0 : i32
    %c0_i32_0 = arith.constant 0 : i32
    %c0_i32_1 = arith.constant 0 : i32
    return %arg0, %c0_i32, %c0_i32_0 : i32, i32, i32
  }
  func.func @transform_2(%arg0: i32) -> (i32, i32, i32) {
    %c0_i32 = arith.constant 0 : i32
    %c0_i32_0 = arith.constant 0 : i32
    %c0_i32_1 = arith.constant 0 : i32
    return %arg0, %c0_i32, %c0_i32_0 : i32, i32, i32
  }
  func.func @transform_3(%arg0: i32) -> (i32, i32) {
    %c0_i32 = arith.constant 0 : i32
    %c0_i32_0 = arith.constant 0 : i32
    %c0_i32_1 = arith.constant 0 : i32
    return %c0_i32, %c0_i32_0 : i32, i32
  }
  func.func @transform_4(%arg0: i32) -> (i32, i32) {
    %c0_i32 = arith.constant 0 : i32
    %c0_i32_0 = arith.constant 0 : i32
    %c0_i32_1 = arith.constant 0 : i32
    return %c0_i32, %c0_i32_0 : i32, i32
  }
  func.func @transform_5(%arg0: i32) -> (i32, i32) {
    %c0_i32 = arith.constant 0 : i32
    %c0_i32_0 = arith.constant 0 : i32
    %c0_i32_1 = arith.constant 0 : i32
    return %c0_i32, %c0_i32_0 : i32, i32
  }
  func.func @transform_6(%arg0: i32) -> (i32, i32) {
    %c0_i32 = arith.constant 0 : i32
    %c0_i32_0 = arith.constant 0 : i32
    %c0_i32_1 = arith.constant 0 : i32
    return %c0_i32, %c0_i32_0 : i32, i32
  }
  func.func @transform_7(%arg0: i32) -> (i32, i32, i32) {
    %c0_i32 = arith.constant 0 : i32
    %c0_i32_0 = arith.constant 0 : i32
    %c0_i32_1 = arith.constant 0 : i32
    return %arg0, %c0_i32, %c0_i32_0 : i32, i32, i32
  }
}

</mosaic_0001>

<llo_original>
// kernel: cq_concatenate.1
$region0: #{cq_concatenate.1}
  #allocation0 [shape = 'u32[]', space=smem, size = 0x4, offset = 0x4, fixed_abs, tag = 'smem constant byte address 0x4 - core index']
  #allocation1 [shape = 'u32[72,128]{1,0:T(1,128)}', space=vmem, size = 0x9000, scoped, tag = 'internal scratch']
  %s0 = inlined_call_operand.vmem [shape: bf16[4,16,128], index: 0, kind: input, shape index: {}]
  %s1 = inlined_call_operand.vmem [shape: f32[4,8,128], index: 1, kind: input, shape index: {}]
  %s2 = inlined_call_operand.vmem [shape: f32[4,1,8], index: 2, kind: input, shape index: {}]
  %s3 = inlined_call_operand.vmem [shape: f32[1,128], index: 3, kind: input, shape index: {}]
  %s4 = inlined_call_operand.vmem [shape: bf16[128,128], index: 4, kind: input, shape index: {}]
  %s5 = inlined_call_operand.vmem [shape: bf16[128,128], index: 5, kind: input, shape index: {}]
  %s6 = inlined_call_operand.vmem [shape: f32[1,128], index: 6, kind: input, shape index: {}]
  %s7 = inlined_call_operand.hbm [shape: bf16[4,16,128], index: 7, kind: output, shape index: {}]
  %s8 = sld [smem:[#allocation0]]
  $region61: #{cq_concatenate.1} parent=0
    _
  %s10 = ssub.s32 1, %s8
  %s11 = scalar_select 0, %s10, %s8
  $region1: #{cq_concatenate.1} parent=0
    #allocation2 [shape = 'u8[16384]{0}', space=vmem, size = 0x4000, scoped, tag = 'output window, operand 0']
    #allocation3 [shape = 's32[2]{0}', space=sflag, size = 0x8, scoped, tag = 'scoped memory for cq_concatenate.1']
    %12 = vsyncpa [#allocation3], 0
    %s13 = scalar_lea.sflag [#allocation3], 1
    %14 = vsyncpa %s13, 0
    loop: start=0, step=1, limit=4
    $region2: #{cq_concatenate.1} parent=1 // loop_pre_header
      _
    $region3: #{cq_concatenate.1} parent=1 // loop_header
      %s16 = sphi 0, %s20
      %p17 = scmp.ge.s32.totalorder %s16, 4
      %s26 = sphi 0, %s28
      %s29 = sphi 0, %s26
      %s30 = sphi 0, %s29
      %s46 = sphi 0, %s30
      %s52 = sphi 0, %s54
      %s55 = sphi 0, %s52
      %s56 = sphi 0, %s55
      %s72 = sphi 0, %s56
      %s78 = sphi 0, %s80
      %s81 = sphi 0, %s78
      %s82 = sphi 0, %s81
      %s98 = sphi 0, %s82
      %s102 = sphi 0, %s102
      %s104 = sphi 0, %s102
      %s105 = sphi 0, %s104
      %s119 = sphi 0, %s105
      %s123 = sphi 0, %s123
      %s125 = sphi 0, %s123
      %s126 = sphi 0, %s125
      %s140 = sphi 0, %s126
      %s144 = sphi 0, %s144
      %s146 = sphi 0, %s144
      %s147 = sphi 0, %s146
      %s161 = sphi 0, %s147
      %s165 = sphi 0, %s165
      %s167 = sphi 0, %s165
      %s168 = sphi 0, %s167
      %s182 = sphi 0, %s168
      %s188 = sphi 0, %s190
      %s191 = sphi 0, %s188
      %s192 = sphi 0, %s191
      %s208 = sphi 0, %s192
    $region4: #{cq_concatenate.1} parent=1 // loop_header_branch
      %19 = sbr.rel (%p17) target = $region8
    $region5: #{cq_concatenate.1} parent=1 // loop_body
      %s21 = ssub.s32 %s16, 1
      %s22 = ssub.s32 %s16, 2
      %s23 = sadd.s32 %s16, 1
      %s24 = ssub.s32 %s16, %s23
      %p25 = scmp.eq.s32.totalorder %s24, 0
      %s27 = sadd.s32 %s26, 1
      %s28 = scalar_select %p25, %s26, %s27
      %p31 = pneg %p25
      %p32 = scmp.eq.s32.totalorder %s16, 1
      %p33 = por %p31, %p32
      %p34 = scmp.ne.s32.totalorder %s26, %s29
      %p35 = scmp.eq.s32.totalorder %s16, 0
      %p36 = por %p34, %p35
      %p37 = scmp.ne.s32.totalorder %s26, %s29
      %p38 = scmp.eq.s32.totalorder %s21, 1
      %p39 = por %p37, %p38
      %p40 = scmp.ne.s32.totalorder %s29, %s30
      %p41 = scmp.eq.s32.totalorder %s21, 0
      %p42 = por %p40, %p41
      %p43 = scmp.ne.s32.totalorder %s29, %s30
      %p44 = scmp.eq.s32.totalorder %s22, 1
      %p45 = por %p43, %p44
      %p47 = scmp.ne.s32.totalorder %s30, %s46
      %p48 = scmp.eq.s32.totalorder %s22, 0
      %p49 = por %p47, %p48
      %s50 = ssub.s32 %s16, %s23
      %p51 = scmp.eq.s32.totalorder %s50, 0
      %s53 = sadd.s32 %s52, 1
      %s54 = scalar_select %p51, %s52, %s53
      %p57 = pneg %p51
      %p58 = scmp.eq.s32.totalorder %s16, 1
      %p59 = por %p57, %p58
      %p60 = scmp.ne.s32.totalorder %s52, %s55
      %p61 = scmp.eq.s32.totalorder %s16, 0
      %p62 = por %p60, %p61
      %p63 = scmp.ne.s32.totalorder %s52, %s55
      %p64 = scmp.eq.s32.totalorder %s21, 1
      %p65 = por %p63, %p64
      %p66 = scmp.ne.s32.totalorder %s55, %s56
      %p67 = scmp.eq.s32.totalorder %s21, 0
      %p68 = por %p66, %p67
      %p69 = scmp.ne.s32.totalorder %s55, %s56
      %p70 = scmp.eq.s32.totalorder %s22, 1
      %p71 = por %p69, %p70
      %p73 = scmp.ne.s32.totalorder %s56, %s72
      %p74 = scmp.eq.s32.totalorder %s22, 0
      %p75 = por %p73, %p74
      %s76 = ssub.s32 %s16, %s23
      %p77 = scmp.eq.s32.totalorder %s76, 0
      %s79 = sadd.s32 %s78, 1
      %s80 = scalar_select %p77, %s78, %s79
      %p83 = pneg %p77
      %p84 = scmp.eq.s32.totalorder %s16, 1
      %p85 = por %p83, %p84
      %p86 = scmp.ne.s32.totalorder %s78, %s81
      %p87 = scmp.eq.s32.totalorder %s16, 0
      %p88 = por %p86, %p87
      %p89 = scmp.ne.s32.totalorder %s78, %s81
      %p90 = scmp.eq.s32.totalorder %s21, 1
      %p91 = por %p89, %p90
      %p92 = scmp.ne.s32.totalorder %s81, %s82
      %p93 = scmp.eq.s32.totalorder %s21, 0
      %p94 = por %p92, %p93
      %p95 = scmp.ne.s32.totalorder %s81, %s82
      %p96 = scmp.eq.s32.totalorder %s22, 1
      %p97 = por %p95, %p96
      %p99 = scmp.ne.s32.totalorder %s82, %s98
      %p100 = scmp.eq.s32.totalorder %s22, 0
      %p101 = por %p99, %p100
      %s103 = sadd.s32 %s102, 1
      %p106 = scmp.eq.s32.totalorder %s16, 1
      %p107 = scmp.ne.s32.totalorder %s102, %s104
      %p108 = scmp.eq.s32.totalorder %s16, 0
      %p109 = por %p107, %p108
      %p110 = scmp.ne.s32.totalorder %s102, %s104
      %p111 = scmp.eq.s32.totalorder %s21, 1
      %p112 = por %p110, %p111
      %p113 = scmp.ne.s32.totalorder %s104, %s105
      %p114 = scmp.eq.s32.totalorder %s21, 0
      %p115 = por %p113, %p114
      %p116 = scmp.ne.s32.totalorder %s104, %s105
      %p117 = scmp.eq.s32.totalorder %s22, 1
      %p118 = por %p116, %p117
      %p120 = scmp.ne.s32.totalorder %s105, %s119
      %p121 = scmp.eq.s32.totalorder %s22, 0
      %p122 = por %p120, %p121
      %s124 = sadd.s32 %s123, 1
      %p127 = scmp.eq.s32.totalorder %s16, 1
      %p128 = scmp.ne.s32.totalorder %s123, %s125
      %p129 = scmp.eq.s32.totalorder %s16, 0
      %p130 = por %p128, %p129
      %p131 = scmp.ne.s32.totalorder %s123, %s125
      %p132 = scmp.eq.s32.totalorder %s21, 1
      %p133 = por %p131, %p132
      %p134 = scmp.ne.s32.totalorder %s125, %s126
      %p135 = scmp.eq.s32.totalorder %s21, 0
      %p136 = por %p134, %p135
      %p137 = scmp.ne.s32.totalorder %s125, %s126
      %p138 = scmp.eq.s32.totalorder %s22, 1
      %p139 = por %p137, %p138
      %p141 = scmp.ne.s32.totalorder %s126, %s140
      %p142 = scmp.eq.s32.totalorder %s22, 0
      %p143 = por %p141, %p142
      %s145 = sadd.s32 %s144, 1
      %p148 = scmp.eq.s32.totalorder %s16, 1
      %p149 = scmp.ne.s32.totalorder %s144, %s146
      %p150 = scmp.eq.s32.totalorder %s16, 0
      %p151 = por %p149, %p150
      %p152 = scmp.ne.s32.totalorder %s144, %s146
      %p153 = scmp.eq.s32.totalorder %s21, 1
      %p154 = por %p152, %p153
      %p155 = scmp.ne.s32.totalorder %s146, %s147
      %p156 = scmp.eq.s32.totalorder %s21, 0
      %p157 = por %p155, %p156
      %p158 = scmp.ne.s32.totalorder %s146, %s147
      %p159 = scmp.eq.s32.totalorder %s22, 1
      %p160 = por %p158, %p159
      %p162 = scmp.ne.s32.totalorder %s147, %s161
      %p163 = scmp.eq.s32.totalorder %s22, 0
      %p164 = por %p162, %p163
      %s166 = sadd.s32 %s165, 1
      %p169 = scmp.eq.s32.totalorder %s16, 1
      %p170 = scmp.ne.s32.totalorder %s165, %s167
      %p171 = scmp.eq.s32.totalorder %s16, 0
      %p172 = por %p170, %p171
      %p173 = scmp.ne.s32.totalorder %s165, %s167
      %p174 = scmp.eq.s32.totalorder %s21, 1
      %p175 = por %p173, %p174
      %p176 = scmp.ne.s32.totalorder %s167, %s168
      %p177 = scmp.eq.s32.totalorder %s21, 0
      %p178 = por %p176, %p177
      %p179 = scmp.ne.s32.totalorder %s167, %s168
      %p180 = scmp.eq.s32.totalorder %s22, 1
      %p181 = por %p179, %p180
      %p183 = scmp.ne.s32.totalorder %s168, %s182
      %p184 = scmp.eq.s32.totalorder %s22, 0
      %p185 = por %p183, %p184
      %s186 = ssub.s32 %s16, %s23
      %p187 = scmp.eq.s32.totalorder %s186, 0
      %s189 = sadd.s32 %s188, 1
      %s190 = scalar_select %p187, %s188, %s189
      %p193 = pneg %p187
      %p194 = scmp.eq.s32.totalorder %s16, 1
      %p195 = por %p193, %p194
      %p196 = scmp.ne.s32.totalorder %s188, %s191
      %p197 = scmp.eq.s32.totalorder %s16, 0
      %p198 = por %p196, %p197
      %p199 = scmp.ne.s32.totalorder %s188, %s191
      %p200 = scmp.eq.s32.totalorder %s21, 1
      %p201 = por %p199, %p200
      %p202 = scmp.ne.s32.totalorder %s191, %s192
      %p203 = scmp.eq.s32.totalorder %s21, 0
      %p204 = por %p202, %p203
      %p205 = scmp.ne.s32.totalorder %s191, %s192
      %p206 = scmp.eq.s32.totalorder %s22, 1
      %p207 = por %p205, %p206
      %p209 = scmp.ne.s32.totalorder %s192, %s208
      %p210 = scmp.eq.s32.totalorder %s22, 0
      %p211 = por %p209, %p210
      %p212 = scmp.le.s32.totalorder 1, %s16
      %p213 = scmp.lt.s32.totalorder %s16, 3
      %p214 = pnand %p212, %p213
      %p215 = pneg %p214
      // Predicated region
      $region9: #{cq_concatenate.1} parent=5 // pred_check
        _
      $region10: #{cq_concatenate.1} parent=5 // pred_check_branch
        %217 = sbr.rel (%p214) target = $region12
      $region11: #{cq_concatenate.1} parent=5 // pred_region
        %s218 = ssub.s32 %s16, 1
        // Predicated region
        $region13: #{cq_concatenate.1} parent=11 // pred_check
          %p219 = pneg %p115
        $region14: #{cq_concatenate.1} parent=11 // pred_check_branch
          %221 = sbr.rel (%p219) target = $region16
        $region15: #{cq_concatenate.1} parent=11 // pred_region
          _
        $region16: #{cq_concatenate.1} parent=11 // pred_fallthru
          _
        // Predicated region
        $region17: #{cq_concatenate.1} parent=11 // pred_check
          %p222 = pneg %p136
        $region18: #{cq_concatenate.1} parent=11 // pred_check_branch
          %224 = sbr.rel (%p222) target = $region20
        $region19: #{cq_concatenate.1} parent=11 // pred_region
          _
        $region20: #{cq_concatenate.1} parent=11 // pred_fallthru
          _
        // Predicated region
        $region21: #{cq_concatenate.1} parent=11 // pred_check
          %p225 = pneg %p157
        $region22: #{cq_concatenate.1} parent=11 // pred_check_branch
          %227 = sbr.rel (%p225) target = $region24
        $region23: #{cq_concatenate.1} parent=11 // pred_region
          _
        $region24: #{cq_concatenate.1} parent=11 // pred_fallthru
          _
        // Predicated region
        $region25: #{cq_concatenate.1} parent=11 // pred_check
          %p228 = pneg %p178
        $region26: #{cq_concatenate.1} parent=11 // pred_check_branch
          %230 = sbr.rel (%p228) target = $region28
        $region27: #{cq_concatenate.1} parent=11 // pred_region
          _
        $region28: #{cq_concatenate.1} parent=11 // pred_fallthru
          _
      $region12: #{cq_concatenate.1} parent=5 // pred_fallthru
        _
      %p231 = scmp.lt.s32.totalorder %s16, 2
      // Predicated region
      $region29: #{cq_concatenate.1} parent=5 // pred_check
        %p232 = pneg %p231
      $region30: #{cq_concatenate.1} parent=5 // pred_check_branch
        %234 = sbr.rel (%p232) target = $region32
      $region31: #{cq_concatenate.1} parent=5 // pred_region
        // Predicated region
        $region33: #{cq_concatenate.1} parent=31 // pred_check
          %p235 = pneg %p36
        $region34: #{cq_concatenate.1} parent=31 // pred_check_branch
          %237 = sbr.rel (%p235) target = $region36
        $region35: #{cq_concatenate.1} parent=31 // pred_region
          %s238 = smul.u32 2, %s16
          %p239 = scmp.lt.s32.totalorder %s238, 3
          %s240 = scalar_select %p239, %s238, 3
          %s241 = smul.addr %s240, 2
          %s242 = smul.addr %s241, 4
          %s243 = scalar_lea.vmem %s0, %s242
          %s244 = smul.u32 2, %s16
        $region36: #{cq_concatenate.1} parent=31 // pred_fallthru
          _
        // Predicated region
        $region37: #{cq_concatenate.1} parent=31 // pred_check
          %p245 = pneg %p62
        $region38: #{cq_concatenate.1} parent=31 // pred_check_branch
          %247 = sbr.rel (%p245) target = $region40
        $region39: #{cq_concatenate.1} parent=31 // pred_region
          %s248 = smul.u32 2, %s16
          %p249 = scmp.lt.s32.totalorder %s248, 3
          %s250 = scalar_select %p249, %s248, 3
          %s251 = smul.addr %s250, 8
          %s252 = scalar_lea.vmem %s1, %s251
          %s253 = smul.u32 2, %s16
        $region40: #{cq_concatenate.1} parent=31 // pred_fallthru
          _
        // Predicated region
        $region41: #{cq_concatenate.1} parent=31 // pred_check
          %p254 = pneg %p88
        $region42: #{cq_concatenate.1} parent=31 // pred_check_branch
          %256 = sbr.rel (%p254) target = $region44
        $region43: #{cq_concatenate.1} parent=31 // pred_region
          %s257 = smul.u32 2, %s16
          %p258 = scmp.lt.s32.totalorder %s257, 3
          %s259 = scalar_select %p258, %s257, 3
          %s260 = scalar_lea.vmem %s2, %s259
          %s261 = smul.u32 2, %s16
        $region44: #{cq_concatenate.1} parent=31 // pred_fallthru
          _
      $region32: #{cq_concatenate.1} parent=5 // pred_fallthru
        _
      %p262 = scmp.le.s32.totalorder 1, %s16
      %p263 = scmp.lt.s32.totalorder %s16, 3
      %p264 = pnand %p262, %p263
      %p265 = pneg %p264
      // Predicated region
      $region45: #{cq_concatenate.1} parent=5 // pred_check
        _
      $region46: #{cq_concatenate.1} parent=5 // pred_check_branch
        %267 = sbr.rel (%p264) target = $region48
      $region47: #{cq_concatenate.1} parent=5 // pred_region
        %s268 = ssub.s32 %s16, 1
        %s269 = smul.u32 2, %s21
        %p270 = scmp.lt.s32.totalorder %s269, 3
        %s271 = scalar_select %p270, %s269, 3
        %s272 = smul.addr %s271, 2
        %s273 = smul.addr %s272, 4
        %s274 = scalar_lea.vmem %s0, %s273
        %p275 = pneg %p42
        %p276 = pneg %p39
        %s277 = smul.u32 2, %s21
        %p278 = scmp.lt.s32.totalorder %s277, 3
        %s279 = scalar_select %p278, %s277, 3
        %s280 = smul.addr %s279, 8
        %s281 = scalar_lea.vmem %s1, %s280
        %p282 = pneg %p68
        %p283 = pneg %p65
        %s284 = smul.u32 2, %s21
        %p285 = scmp.lt.s32.totalorder %s284, 3
        %s286 = scalar_select %p285, %s284, 3
        %s287 = scalar_lea.vmem %s2, %s286
        %p288 = pneg %p94
        %p289 = pneg %p91
        %p290 = pneg %p115
        %p291 = pneg %p112
        %p292 = pneg %p136
        %p293 = pneg %p133
        %p294 = pneg %p157
        %p295 = pneg %p154
        %p296 = pneg %p178
        %p297 = pneg %p175
        %p298 = pneg %p204
        %p299 = pneg %p201
        %s300 = sand.u32 %s191, 1
        %s301 = scalar_lea.sflag [#allocation3], %s300
        %s302 = sand.u32 %s191, 1
        %s303 = smul.addr %s302, 16
        %s304 = scalar_lea.vmem [#allocation2], %s303
        %s305 = smul.u32 2, %s21
        %p306 = scmp.lt.s32.totalorder %s305, 3
        %s307 = scalar_select %p306, %s305, 3
        %s308 = smul.addr %s307, 2
        %s309 = smul.addr %s308, 4
        %s310 = scalar_lea.vmem %s0, %s309
        %s311 = smul.u32 2, %s21
        %s312 = smul.u32 2, %s21
        %p313 = scmp.lt.s32.totalorder %s312, 3
        %s314 = scalar_select %p313, %s312, 3
        %s315 = smul.addr %s314, 8
        %s316 = scalar_lea.vmem %s1, %s315
        %s317 = smul.u32 2, %s21
        %s318 = smul.u32 2, %s21
        %p319 = scmp.lt.s32.totalorder %s318, 3
        %s320 = scalar_select %p319, %s318, 3
        %s321 = scalar_lea.vmem %s2, %s320
        %s322 = smul.u32 2, %s21
        %s323 = smul.u32 2, %s21
        %v324 = vld [vmem:[%s316] sm:$0xff]
        %v325 = vld [vmem:[%s316 + $0x8] sm:$0xff]
        %v326 = vld [vmem:[%s3] sm:$0x1]
        %v327 = vld [vmem:[%s321] sm:$0x1]
        %v328 = vld [vmem:[%s321 + $0x1] sm:$0x1]
        %v330 = vperm.slane %v326, 0
        %v332 = vmul.f32 %v324, %v330
        %v333 = vmul.f32 %v325, %v330
        %334 = vadd.xlane.f32.xlu0 %v332
        %v335 = vpop.xlane.xlu0 %334
        %336 = vadd.xlane.f32.xlu0 %v333
        %v337 = vpop.xlane.xlu0 %336
        %v338 = vsub.f32 1.0, %v327
        %v339 = vsub.f32 1.0, %v328
        %v340 = vmul.f32 %v338, -1e+30
        %v341 = vmul.f32 %v339, -1e+30
        %v344 = vperm.slane %v340, 0
        %v345 = vperm.slane %v341, 0
        %v346 = vlaneseq
        %v347 = vshrl.u32 %v346, 7
        %349 = vset.pattern.permute.xlu0 %v347
        %350 = vperm.xlu0 %349, %v344
        %v351 = vpop.permute.xlu0 %350
        %v352 = vlaneseq
        %v353 = vshrl.u32 %v352, 7
        %355 = vset.pattern.permute.xlu0 %v353
        %356 = vperm.xlu0 %355, %v345
        %v357 = vpop.permute.xlu0 %356
        %v360 = vadd.f32 %v335, %v351
        %v361 = vadd.f32 %v337, %v357
        %364 = vset.pattern.permute.xlu0 0
        %365 = vperm.xlu0 %364, %v360
        %v366 = vpop.permute.xlu0 %365
        %367 = vset.pattern.permute.xlu0 0
        %368 = vperm.xlu0 %367, %v361
        %v369 = vpop.permute.xlu0 %368
        %v370 = vlaneseq
        %v371 = vand.u32 %v370, 127
        %v372 = vperm.slane %v366, %v371
        %v373 = vperm.slane %v369, %v371
        %vm374 = vcmask 1041409
        %v375 = vsel %vm374, %v373, %v372
        %vm377 = vcmask 58368
        %v378 = vsel %vm377, %v375, -inf
        %379 = vmax.xlane.f32.xlu0 %v378
        %v380 = vpop.xlane.xlu0 %379
        %v382 = vperm.slane %v380, 0
        %v383 = vperm.slane %v380, 1
        %v386 = vsub.f32 %v360, %v382
        %v387 = vsub.f32 %v361, %v383
        %v388 = vmul.f32 %v386, 1.442695
        %v389 = vpow.pop %v388
        %v390 = vmul.f32 %v387, 1.442695
        %v391 = vpow.pop %v390
        %394 = vset.pattern.permute.xlu0 0
        %395 = vperm.xlu0 %394, %v389
        %v396 = vpop.permute.xlu0 %395
        %397 = vset.pattern.permute.xlu0 0
        %398 = vperm.xlu0 %397, %v391
        %v399 = vpop.permute.xlu0 %398
        %v400 = vperm.slane %v396, %v371
        %v401 = vperm.slane %v399, %v371
        %v402 = vsel %vm374, %v401, %v400
        %v404 = vsel %vm377, %v402, 0.0
        %405 = vadd.xlane.f32.xlu0 %v404
        %v406 = vpop.xlane.xlu0 %405
        %v408 = vperm.slane %v406, 0
        %v409 = vperm.slane %v406, 1
        %v412 = vrcp.pop %v408
        %v413 = vmul.f32 %v408, %v412
        %v414 = vsub.f32 1.0, %v413
        %v415 = vmul.f32 %v412, %v414
        %v416 = vadd.f32 %v412, %v415
        %vm417 = vweird.f32 %v408
        %vm418 = vweird.f32 %v412
        %vm419 = vmor %vm417, %vm418
        %v420 = vsel %vm419, %v412, %v416
        %v421 = vand.u32 2147483647, %v408
        %vm422 = vcmp.eq.f32.partialorder %v421, 8.507059e+37
        %v423 = vand.u32 %v408, 2147483648
        %v424 = vor.u32 1.1754944e-38, %v423
        %v425 = vsel %vm422, %v424, %v420
        %v426 = vmul.f32 %v389, %v425
        %v427 = vrcp.pop %v409
        %v428 = vmul.f32 %v409, %v427
        %v429 = vsub.f32 1.0, %v428
        %v430 = vmul.f32 %v427, %v429
        %v431 = vadd.f32 %v427, %v430
        %vm432 = vweird.f32 %v409
        %vm433 = vweird.f32 %v427
        %vm434 = vmor %vm432, %vm433
        %v435 = vsel %vm434, %v427, %v431
        %v436 = vand.u32 2147483647, %v409
        %vm437 = vcmp.eq.f32.partialorder %v436, 8.507059e+37
        %v438 = vand.u32 %v409, 2147483648
        %v439 = vor.u32 1.1754944e-38, %v438
        %v440 = vsel %vm437, %v439, %v435
        %v441 = vmul.f32 %v391, %v440
        %443 = vset.pattern.permute.xlu0 0
        %444 = vperm.xlu0 %443, %v426
        %v445 = vpop.permute.xlu0 %444
        %448 = vset.pattern.permute.xlu0 0
        %449 = vperm.xlu0 %448, %v441
        %v450 = vpop.permute.xlu0 %449
        %v452 = vmul.f32 %v445, %v324
        %v453 = vmul.f32 %v450, %v325
        %v454 = vrot.slane %v452, 4
        %v455 = vadd.f32 %v452, %v454
        %v456 = vrot.slane %v455, 2
        %v457 = vadd.f32 %v455, %v456
        %v458 = vrot.slane %v457, 1
        %v459 = vadd.f32 %v457, %v458
        %v460 = vrot.slane %v453, 4
        %v461 = vadd.f32 %v453, %v460
        %v462 = vrot.slane %v461, 2
        %v463 = vadd.f32 %v461, %v462
        %v464 = vrot.slane %v463, 1
        %v465 = vadd.f32 %v463, %v464
        %v466 = vld [vmem:[%s310] sm:$0xf]
        %v467 = vld [vmem:[%s310 + $0x4] sm:$0xf]
        %v468 = vld [vmem:[%s310 + $0x8] sm:$0xf]
        %v469 = vld [vmem:[%s310 + $0xc] sm:$0xf]
        %v470 = vld [vmem:[%s4] sm:$0xf]
        %v471 = vld [vmem:[%s4 + $0x4] sm:$0xf]
        %v472 = vld [vmem:[%s4 + $0x8] sm:$0xf]
        %v473 = vld [vmem:[%s4 + $0xc] sm:$0xf]
        %v474 = vld [vmem:[%s4 + $0x10] sm:$0xf]
        %v475 = vld [vmem:[%s4 + $0x14] sm:$0xf]
        %v476 = vld [vmem:[%s4 + $0x18] sm:$0xf]
        %v477 = vld [vmem:[%s4 + $0x1c] sm:$0xf]
        %v478 = vld [vmem:[%s4 + $0x20] sm:$0xf]
        %v479 = vld [vmem:[%s4 + $0x24] sm:$0xf]
        %v480 = vld [vmem:[%s4 + $0x28] sm:$0xf]
        %v481 = vld [vmem:[%s4 + $0x2c] sm:$0xf]
        %v482 = vld [vmem:[%s4 + $0x30] sm:$0xf]
        %v483 = vld [vmem:[%s4 + $0x34] sm:$0xf]
        %v484 = vld [vmem:[%s4 + $0x38] sm:$0xf]
        %v485 = vld [vmem:[%s4 + $0x3c] sm:$0xf]
        %v490 = vunpack.c.l.b16 %v466
        %v491 = vunpack.c.l.b16 %v467
        %v492 = vunpack.c.l.b16 %v468
        %v493 = vunpack.c.l.b16 %v469
        %v494 = vpack.c.b16 %v491, %v490
        %v495 = vpack.c.b16 %v493, %v492
        %v514 = vunpack.c.l.b16 %v470
        %v515 = vunpack.c.l.b16 %v471
        %v516 = vunpack.c.l.b16 %v472
        %v517 = vunpack.c.l.b16 %v473
        %v518 = vunpack.c.l.b16 %v474
        %v519 = vunpack.c.l.b16 %v475
        %v520 = vunpack.c.l.b16 %v476
        %v521 = vunpack.c.l.b16 %v477
        %v522 = vunpack.c.l.b16 %v478
        %v523 = vunpack.c.l.b16 %v479
        %v524 = vunpack.c.l.b16 %v480
        %v525 = vunpack.c.l.b16 %v481
        %v526 = vunpack.c.l.b16 %v482
        %v527 = vunpack.c.l.b16 %v483
        %v528 = vunpack.c.l.b16 %v484
        %v529 = vunpack.c.l.b16 %v485
        %v530 = vpack.c.b16 %v515, %v514
        %v531 = vpack.c.b16 %v517, %v516
        %v532 = vpack.c.b16 %v519, %v518
        %v533 = vpack.c.b16 %v521, %v520
        %v534 = vpack.c.b16 %v523, %v522
        %v535 = vpack.c.b16 %v525, %v524
        %v536 = vpack.c.b16 %v527, %v526
        %v537 = vpack.c.b16 %v529, %v528
        %546 = vmatpush.bf16.msra.mxu0 %v537
        %547 = vmatpush.bf16.msra.mxu0 %v536
        %548 = vmatpush.bf16.msra.mxu0 %v535
        %549 = vmatpush.bf16.msra.mxu0 %v534
        %550 = vmatpush.bf16.msra.mxu0 %v533
        %551 = vmatpush.bf16.msra.mxu0 %v532
        %552 = vmatpush.bf16.msra.mxu0 %v531
        %553 = vmatpush.bf16.msra.mxu0 %v530
        %554 = vmatmul.bf16.gmra.mxu0 %v494
        %v555 = vpop.f32.mrf.mxu0
        %v556 = vadd.f32 0.0, %v555
        %v557 = vpop.f32.mrf.mxu0
        %v558 = vadd.f32 0.0, %v557
        %559 = vmatmul.bf16.gmra.mxu0 %v495
        %v560 = vpop.f32.mrf.mxu0
        %v561 = vadd.f32 0.0, %v560
        %v562 = vpop.f32.mrf.mxu0
        %v563 = vadd.f32 0.0, %v562
        %564 = vdwg.mxu0
        %v565 = vpack.c.bf16 %v459, %v459
        %v566 = vpack.c.bf16 %v465, %v465
        %v567 = vld [vmem:[%s5] sm:$0xf]
        %v568 = vld [vmem:[%s5 + $0x4] sm:$0xf]
        %v569 = vld [vmem:[%s5 + $0x8] sm:$0xf]
        %v570 = vld [vmem:[%s5 + $0xc] sm:$0xf]
        %v571 = vld [vmem:[%s5 + $0x10] sm:$0xf]
        %v572 = vld [vmem:[%s5 + $0x14] sm:$0xf]
        %v573 = vld [vmem:[%s5 + $0x18] sm:$0xf]
        %v574 = vld [vmem:[%s5 + $0x1c] sm:$0xf]
        %v575 = vld [vmem:[%s5 + $0x20] sm:$0xf]
        %v576 = vld [vmem:[%s5 + $0x24] sm:$0xf]
        %v577 = vld [vmem:[%s5 + $0x28] sm:$0xf]
        %v578 = vld [vmem:[%s5 + $0x2c] sm:$0xf]
        %v579 = vld [vmem:[%s5 + $0x30] sm:$0xf]
        %v580 = vld [vmem:[%s5 + $0x34] sm:$0xf]
        %v581 = vld [vmem:[%s5 + $0x38] sm:$0xf]
        %v582 = vld [vmem:[%s5 + $0x3c] sm:$0xf]
        %v585 = vunpack.c.l.b16 %v565
        %v586 = vunpack.c.l.b16 %v566
        %v587 = vsel %vm374, %v586, %v585
        %v588 = vpack.c.b16 %v587, %v587
        %v606 = vunpack.c.l.b16 %v567
        %v607 = vunpack.c.l.b16 %v568
        %v608 = vunpack.c.l.b16 %v569
        %v609 = vunpack.c.l.b16 %v570
        %v610 = vunpack.c.l.b16 %v571
        %v611 = vunpack.c.l.b16 %v572
        %v612 = vunpack.c.l.b16 %v573
        %v613 = vunpack.c.l.b16 %v574
        %v614 = vunpack.c.l.b16 %v575
        %v615 = vunpack.c.l.b16 %v576
        %v616 = vunpack.c.l.b16 %v577
        %v617 = vunpack.c.l.b16 %v578
        %v618 = vunpack.c.l.b16 %v579
        %v619 = vunpack.c.l.b16 %v580
        %v620 = vunpack.c.l.b16 %v581
        %v621 = vunpack.c.l.b16 %v582
        %v622 = vpack.c.b16 %v607, %v606
        %v623 = vpack.c.b16 %v609, %v608
        %v624 = vpack.c.b16 %v611, %v610
        %v625 = vpack.c.b16 %v613, %v612
        %v626 = vpack.c.b16 %v615, %v614
        %v627 = vpack.c.b16 %v617, %v616
        %v628 = vpack.c.b16 %v619, %v618
        %v629 = vpack.c.b16 %v621, %v620
        %638 = vmatpush.bf16.msra.mxu0 %v629
        %639 = vmatpush.bf16.msra.mxu0 %v628
        %640 = vmatpush.bf16.msra.mxu0 %v627
        %641 = vmatpush.bf16.msra.mxu0 %v626
        %642 = vmatpush.bf16.msra.mxu0 %v625
        %643 = vmatpush.bf16.msra.mxu0 %v624
        %644 = vmatpush.bf16.msra.mxu0 %v623
        %645 = vmatpush.bf16.msra.mxu0 %v622
        %646 = vmatmul.bf16.gmra.mxu0 %v588
        %v647 = vpop.f32.mrf.mxu0
        %v648 = vadd.f32 0.0, %v647
        %v649 = vpop.f32.mrf.mxu0
        %650 = vdwg.mxu0
        %v652 = vrot.slane %v648, 1
        %v653 = vperm.slane %v648, 0
        %v654 = vperm.slane %v652, 0
        %v657 = vadd.f32 %v556, %v653
        %v658 = vadd.f32 %v558, %v653
        %v659 = vadd.f32 %v561, %v654
        %v660 = vadd.f32 %v563, %v654
        %v661 = vld [vmem:[%s6] sm:$0x1]
        %v663 = vperm.slane %v661, 0
        %v665 = vadd.f32 %v657, %v663
        %v666 = vadd.f32 %v658, %v663
        %v667 = vadd.f32 %v659, %v663
        %v668 = vadd.f32 %v660, %v663
        %v669 = vpack.c.bf16 %v665, %v665
        %v670 = vpack.c.bf16 %v666, %v666
        %v671 = vpack.c.bf16 %v667, %v667
        %v672 = vpack.c.bf16 %v668, %v668
        %673 = vst [vmem:[%s304] sm:$0xf] %v669
        %674 = vst [vmem:[%s304 + $0x4] sm:$0xf] %v670
        %675 = vst [vmem:[%s304 + $0x8] sm:$0xf] %v671
        %676 = vst [vmem:[%s304 + $0xc] sm:$0xf] %v672
        %s677 = sand.u32 %s191, 1
        %s678 = scalar_lea.sflag [#allocation3], %s677
        %s679 = sand.u32 %s191, 1
        %s680 = smul.addr %s679, 16
        %s681 = scalar_lea.vmem [#allocation2], %s680
        // Predicated region
        $region49: #{cq_concatenate.1} parent=47 // pred_check
          %p682 = pneg %p201
        $region50: #{cq_concatenate.1} parent=47 // pred_check_branch
          %684 = sbr.rel (%p682) target = $region52
        $region51: #{cq_concatenate.1} parent=47 // pred_region
          %s685 = smul.u32 2, %s21
          %687 = vsyncadd %s678, 0
          %s688 = smul.addr %s685, 2
          %s689 = smul.addr %s688, 4
          %s690 = scalar_lea.hbm %s7, %s689
          %s691 = sshll.u32 %s681, 4
          %s692 = int_to_ptr.vmem [resolvable:$true] %s691
          %s693 = sshll.u32 %s690, 4
          %s694 = int_to_ptr.hbm [resolvable:$true] %s693
          %699 = dma.vmem_to_hbm [thread:$0]  %s692, 256, %s694, %s678, 64, 64, 4
        $region52: #{cq_concatenate.1} parent=47 // pred_fallthru
          _
      $region48: #{cq_concatenate.1} parent=5 // pred_fallthru
        _
      %p700 = scmp.le.s32.totalorder 2, %s16
      // Predicated region
      $region53: #{cq_concatenate.1} parent=5 // pred_check
        %p701 = pneg %p700
      $region54: #{cq_concatenate.1} parent=5 // pred_check_branch
        %703 = sbr.rel (%p701) target = $region56
      $region55: #{cq_concatenate.1} parent=5 // pred_region
        %s704 = ssub.s32 %s16, 2
        // Predicated region
        $region57: #{cq_concatenate.1} parent=55 // pred_check
          %p705 = pneg %p207
        $region58: #{cq_concatenate.1} parent=55 // pred_check_branch
          %707 = sbr.rel (%p705) target = $region60
        $region59: #{cq_concatenate.1} parent=55 // pred_region
          %s708 = sand.u32 %s192, 1
          %s709 = scalar_lea.sflag [#allocation3], %s708
          %s710 = sand.u32 %s192, 1
          %s711 = smul.addr %s710, 16
          %s712 = scalar_lea.vmem [#allocation2], %s711
          %714 = dma.done %s709, 256
        $region60: #{cq_concatenate.1} parent=55 // pred_fallthru
          _
      $region56: #{cq_concatenate.1} parent=5 // pred_fallthru
        _
    $region6: #{cq_concatenate.1} parent=1 // loop_footer
      %s20 = sadd.s32 1, %s16
    $region7: #{cq_concatenate.1} parent=1 // loop_footer_branch
      %15 = sbr.rel target = $region3
    $region8: #{cq_concatenate.1} parent=1 // loop_exit
      _
    %715 = vsyncpa [#allocation3], 1
    %s716 = scalar_lea.sflag [#allocation3], 1
    %717 = vsyncpa %s716, 1

</llo_original>
